<compile_context>
chip_gen: v7x
topology: tpu7x:2x2x1
jax: 0.10.0
libtpu: 0.0.40
codegen_flags: <defaults>
</compile_context>

<pallas_src>
import functools

import jax
import jax.numpy as jnp
from jax.experimental import pallas as pl
from jax.experimental.pallas import tpu as pltpu


def _round_up(v, m):
    return (v + m - 1) // m * m


def _downconv_kernel(xm_ref, xh_ref, w1_ref, w2_ref, w3_ref, b_ref, o_ref,
                     xx_ref, *, tm, c, c_pad):
    # xm_ref: (tm, 2c)   wide rows: row i = [x_pad[2i] | x_pad[2i+1]] (true C, no lane pad)
    # xh_ref: (8, 2c)    next 8 wide rows (halo for the last output rows)
    # w1_ref: (5c, c_pad) k-major/ci-minor rows; w2_ref/w3_ref: (c_pad, c_pad)
    # b_ref : (3, c_pad) f32 biases (rows: b1, b2, b3)
    # o_ref : (tm, c_pad)  lane-dense output tile
    # xx_ref: (tm + 8, 2c) VMEM scratch (main block + halo, contiguous rows)

    # Stage main block + halo contiguously so the strided-conv row shifts are
    # plain unit-stride slices of one buffer.
    xa = xm_ref[...]                              # (tm, 2c): taps 0,1 for row j
    xx_ref[pl.ds(0, tm), :] = xa
    xx_ref[pl.ds(tm, 8), :] = xh_ref[...]

    b1 = b_ref[0:1, :]
    b2 = b_ref[1:2, :]
    b3 = b_ref[2:3, :]

    # Conv1d(k=5, stride=2) as three accumulated dots on the wide layout
    # (no (tm, 5c) im2col patch is materialized).
    xb = xx_ref[pl.ds(1, tm), :]                  # rows j+1: taps 2,3
    xc = xx_ref[pl.ds(2, tm), pl.ds(0, c)]        # rows j+2: tap 4 (left half only)

    h = jnp.dot(xa, w1_ref[pl.ds(0, 2 * c), :],
                preferred_element_type=jnp.float32)
    h += jnp.dot(xb, w1_ref[pl.ds(2 * c, 2 * c), :],
                 preferred_element_type=jnp.float32)
    h += jnp.dot(xc, w1_ref[pl.ds(4 * c, c), :],
                 preferred_element_type=jnp.float32)
    h += b1
    h = h * jax.nn.sigmoid(h)                     # SiLU in f32

    # Conv1d(k=1) -> SiLU   (activations truncated to compute dtype for the MXU,
    # accumulation + bias + SiLU stay f32)
    h = jnp.dot(h.astype(w2_ref.dtype), w2_ref[...],
                preferred_element_type=jnp.float32) + b2
    h = h * jax.nn.sigmoid(h)

    # Conv1d(k=1)
    h = jnp.dot(h.astype(w3_ref.dtype), w3_ref[...],
                preferred_element_type=jnp.float32) + b3

    o_ref[...] = h.astype(o_ref.dtype)


@functools.partial(jax.jit,
                   static_argnames=("compute_dtype", "tm_max", "trim_output"))
def down_conv1d_block(x, w1, b1, w2, b2, w3, b3, *,
                      compute_dtype=jnp.bfloat16, tm_max=512, trim_output=True):
    """x: (B, L, C). Conv weights in PyTorch layout: w1 (C, C, 5), w2/w3 (C, C, 1)."""
    B, L, C = x.shape
    K, PAD = 5, 2
    L_out = (L + 2 * PAD - K) // 2 + 1

    C_pad = _round_up(C, 128)                       # lane-dense output channels

    in_bytes = jnp.dtype(compute_dtype).itemsize
    out_bytes = jnp.dtype(x.dtype).itemsize

    def _vmem_footprint(tm):
        # Double-buffered inputs/outputs + scratch + (double-buffered) weights.
        main = 2 * tm * 2 * C * in_bytes
        halo = 2 * 8 * 2 * C * in_bytes
        outb = 2 * tm * C_pad * out_bytes
        scr = (tm + 8) * 2 * C * in_bytes
        wts = 2 * (K * C * C_pad + 2 * C_pad * C_pad) * in_bytes
        bias_b = 2 * 8 * C_pad * 4
        return main + halo + outb + scr + wts + bias_b

    # Output rows per grid step: big tiles amortize the ~0.35 us/step overhead,
    # clamped so the per-step footprint stays within v7x's 64 MiB VMEM.
    TM = max(8, min(_round_up(int(tm_max), 8), _round_up(L_out, 8)))
    while TM > 8 and _vmem_footprint(TM) > 40 * (1 << 20):
        TM = max(8, _round_up(TM // 2, 8))

    num_tiles = -(-L_out // TM)
    L_out_pad = num_tiles * TM
    L_in_pad = 2 * L_out_pad + 16                   # room for main blocks + halo
    halo_step = TM // 8                             # 8 * idx == TM * (t + 1)

    # Pad ONLY along L (conv front pad of 2 + zero tail); no channel padding in
    # HBM.  The compute-dtype cast fuses into the same pass; the reshape to
    # wide rows [x_pad[2i] | x_pad[2i+1]] is free.
    x_pad = jnp.pad(x, ((0, 0), (PAD, L_in_pad - L - PAD), (0, 0)))
    x_wide = x_pad.reshape(B, L_in_pad // 2, 2 * C).astype(compute_dtype)

    # Conv weights -> matmul matrices.  Rows are k-major, ci-minor over the
    # TRUE C input channels; only output columns are padded to C_pad (zero cols
    # keep padded output channels exactly zero through bias + SiLU).
    w1_km = jnp.transpose(w1, (2, 1, 0))                          # (K, ci, co)
    w1_mat = (jnp.zeros((K, C, C_pad), jnp.float32)
              .at[:, :, :C].set(w1_km)
              .reshape(K * C, C_pad).astype(compute_dtype))

    def _pointwise(w):
        wm = jnp.transpose(w[:, :, 0], (1, 0))                    # (ci, co)
        return (jnp.zeros((C_pad, C_pad), jnp.float32)
                .at[:C, :C].set(wm).astype(compute_dtype))

    w2_mat = _pointwise(w2)
    w3_mat = _pointwise(w3)

    bias = (jnp.zeros((3, C_pad), jnp.float32)
            .at[0, :C].set(b1).at[1, :C].set(b2).at[2, :C].set(b3))

    kernel = functools.partial(_downconv_kernel, tm=TM, c=C, c_pad=C_pad)

    vmem_limit = int(min(48 * (1 << 20),
                         max(32 * (1 << 20),
                             _vmem_footprint(TM) + 8 * (1 << 20))))

    out = pl.pallas_call(
        kernel,
        out_shape=jax.ShapeDtypeStruct((B, L_out_pad, C_pad), x.dtype),
        grid_spec=pltpu.PrefetchScalarGridSpec(
            num_scalar_prefetch=0,
            grid=(B, num_tiles),
            in_specs=[
                # TM wide input rows feeding this output tile (true-C width)
                pl.BlockSpec((None, TM, 2 * C), lambda b, t: (b, t, 0)),
                # 8-row halo starting right after the main block
                pl.BlockSpec((None, 8, 2 * C),
                             lambda b, t: (b, (t + 1) * halo_step, 0)),
                # weights / biases: constant index maps -> fetched once, VMEM-resident
                pl.BlockSpec((K * C, C_pad), lambda b, t: (0, 0)),
                pl.BlockSpec((C_pad, C_pad), lambda b, t: (0, 0)),
                pl.BlockSpec((C_pad, C_pad), lambda b, t: (0, 0)),
                pl.BlockSpec((3, C_pad), lambda b, t: (0, 0)),
            ],
            out_specs=pl.BlockSpec((None, TM, C_pad), lambda b, t: (b, t, 0)),
            scratch_shapes=[pltpu.VMEM((TM + 8, 2 * C), x_wide.dtype)],
        ),
        compiler_params=pltpu.CompilerParams(
            dimension_semantics=("parallel", "parallel"),
            vmem_limit_bytes=vmem_limit,
        ),
    )(x_wide, x_wide, w1_mat, w2_mat, w3_mat, bias)

    if trim_output:
        # Matches the PyTorch module exactly. Pass trim_output=False to keep
        # the padded (L_out_pad, C_pad) slab and skip this extra HBM pass.
        return out[:, :L_out, :C]
    return out


def _ref_forward(x, w1, b1, w2, b2, w3, b3):
    """Pure-JAX reference mirroring the PyTorch module (NCH conv layout)."""
    xt = jnp.transpose(x, (0, 2, 1))  # (B, C, L)
    dn = ("NCH", "OIH", "NCH")
    y = jax.lax.conv_general_dilated(
        xt, w1, window_strides=(2,), padding=[(2, 2)], dimension_numbers=dn
    ) + b1[None, :, None]
    y = jax.nn.silu(y)
    y = jax.lax.conv_general_dilated(
        y, w2, window_strides=(1,), padding=[(0, 0)], dimension_numbers=dn
    ) + b2[None, :, None]
    y = jax.nn.silu(y)
    y = jax.lax.conv_general_dilated(
        y, w3, window_strides=(1,), padding=[(0, 0)], dimension_numbers=dn
    ) + b3[None, :, None]
    return jnp.transpose(y, (0, 2, 1))  # (B, L_out, C)


if __name__ == "__main__":
    B, L, DIM = 2, 16, 32

    key = jax.random.PRNGKey(0)
    kx, k1, k2, k3, kb1, kb2, kb3 = jax.random.split(key, 7)

    x = jax.random.normal(kx, (B, L, DIM), dtype=jnp.float32)

    # Deterministic parameter init (PyTorch Conv1d weight layout: (out, in, k))
    w1 = jax.random.normal(k1, (DIM, DIM, 5), dtype=jnp.float32) * 0.1
    b1 = jax.random.normal(kb1, (DIM,), dtype=jnp.float32) * 0.1
    w2 = jax.random.normal(k2, (DIM, DIM, 1), dtype=jnp.float32) * 0.1
    b2 = jax.random.normal(kb2, (DIM,), dtype=jnp.float32) * 0.1
    w3 = jax.random.normal(k3, (DIM, DIM, 1), dtype=jnp.float32) * 0.1
    b3 = jax.random.normal(kb3, (DIM,), dtype=jnp.float32) * 0.1

    ref = _ref_forward(x, w1, b1, w2, b2, w3, b3)

    # f32 compute path: tight check against the XLA conv reference.
    out_f32 = jax.block_until_ready(
        down_conv1d_block(x, w1, b1, w2, b2, w3, b3, compute_dtype=jnp.float32))
    assert out_f32.shape == (B, L // 2, DIM), out_f32.shape
    assert jnp.allclose(out_f32, ref, atol=1e-4, rtol=1e-4), float(
        jnp.max(jnp.abs(out_f32 - ref)))

    # Default path: bf16 matmul inputs (all generations), f32 accumulate +
    # f32 bias/SiLU; checked with a bf16-appropriate tolerance.
    out_bf16 = jax.block_until_ready(
        down_conv1d_block(x, w1, b1, w2, b2, w3, b3))
    assert out_bf16.shape == (B, L // 2, DIM), out_bf16.shape
    assert jnp.allclose(out_bf16, ref, atol=1e-1, rtol=1e-1), float(
        jnp.max(jnp.abs(out_bf16 - ref)))

    print("KERNEL_OK")
</pallas_src>

<mosaic_0001>
module attributes {stable_mosaic.version = 11 : i64} {
  func.func @_downconv_kernel(%arg0: i32, %arg1: i32, %arg2: memref<1x8x64xf32, #tpu.memory_space<vmem>>, %arg3: memref<1x8x64xf32, #tpu.memory_space<vmem>>, %arg4: memref<160x128xf32, #tpu.memory_space<vmem>>, %arg5: memref<128x128xf32, #tpu.memory_space<vmem>>, %arg6: memref<128x128xf32, #tpu.memory_space<vmem>>, %arg7: memref<3x128xf32, #tpu.memory_space<vmem>>, %arg8: memref<1x8x128xf32, #tpu.memory_space<vmem>>, %arg9: memref<16x64xf32, #tpu.memory_space<vmem>>) attributes {dimension_semantics = [#tpu.dimension_semantics<parallel>, #tpu.dimension_semantics<parallel>], iteration_bounds = array<i64: 2, 1>, scalar_prefetch = 0 : i64, scratch_operands = 1 : i64, tpu.core_type = #tpu.core_type<tc>, window_params = [{transform_indices = @transform_0, window_bounds = array<i64: 1, 8, 64>}, {transform_indices = @transform_1, window_bounds = array<i64: 1, 8, 64>}, {pipeline_mode = #tpu.pipeline_mode<synchronous>, transform_indices = @transform_2, window_bounds = array<i64: 160, 128>}, {pipeline_mode = #tpu.pipeline_mode<synchronous>, transform_indices = @transform_3, window_bounds = array<i64: 128, 128>}, {pipeline_mode = #tpu.pipeline_mode<synchronous>, transform_indices = @transform_4, window_bounds = array<i64: 128, 128>}, {pipeline_mode = #tpu.pipeline_mode<synchronous>, transform_indices = @transform_5, window_bounds = array<i64: 3, 128>}, {transform_indices = @transform_6, window_bounds = array<i64: 1, 8, 128>}]} {
    %c0 = arith.constant 0 : index
    %c0_0 = arith.constant 0 : index
    %c0_1 = arith.constant 0 : index
    %0 = vector.load %arg2[%c0, %c0_0, %c0_1] : memref<1x8x64xf32, #tpu.memory_space<vmem>>, vector<1x8x64xf32>
    %1 = vector.shape_cast %0 : vector<1x8x64xf32> to vector<8x64xf32>
    %c0_2 = arith.constant 0 : index
    %c0_3 = arith.constant 0 : index
    %2 = vector.load %arg9[%c0_2, %c0_3] : memref<16x64xf32, #tpu.memory_space<vmem>>, vector<8x64xf32>
    tpu.vector_store %arg9[%c0_2, %c0_3], %1 {strides = array<i32>} : memref<16x64xf32, #tpu.memory_space<vmem>>, vector<8x64xf32>,
    %c0_4 = arith.constant 0 : index
    %c0_5 = arith.constant 0 : index
    %c0_6 = arith.constant 0 : index
    %3 = vector.load %arg3[%c0_4, %c0_5, %c0_6] : memref<1x8x64xf32, #tpu.memory_space<vmem>>, vector<1x8x64xf32>
    %4 = vector.shape_cast %3 : vector<1x8x64xf32> to vector<8x64xf32>
    %c8 = arith.constant 8 : index
    %c0_7 = arith.constant 0 : index
    %5 = vector.load %arg9[%c8, %c0_7] : memref<16x64xf32, #tpu.memory_space<vmem>>, vector<8x64xf32>
    tpu.vector_store %arg9[%c8, %c0_7], %4 {strides = array<i32>} : memref<16x64xf32, #tpu.memory_space<vmem>>, vector<8x64xf32>,
    %c0_8 = arith.constant 0 : index
    %c0_9 = arith.constant 0 : index
    %6 = vector.load %arg7[%c0_8, %c0_9] : memref<3x128xf32, #tpu.memory_space<vmem>>, vector<1x128xf32>
    %c1 = arith.constant 1 : index
    %c0_10 = arith.constant 0 : index
    %7 = vector.load %arg7[%c1, %c0_10] : memref<3x128xf32, #tpu.memory_space<vmem>>, vector<1x128xf32>
    %c2 = arith.constant 2 : index
    %c0_11 = arith.constant 0 : index
    %8 = vector.load %arg7[%c2, %c0_11] : memref<3x128xf32, #tpu.memory_space<vmem>>, vector<1x128xf32>
    %c1_12 = arith.constant 1 : index
    %c0_13 = arith.constant 0 : index
    %9 = vector.load %arg9[%c1_12, %c0_13] : memref<16x64xf32, #tpu.memory_space<vmem>>, vector<8x64xf32>
    %c2_14 = arith.constant 2 : index
    %c0_15 = arith.constant 0 : index
    %10 = vector.load %arg9[%c2_14, %c0_15] : memref<16x64xf32, #tpu.memory_space<vmem>>, vector<8x32xf32>
    %c0_16 = arith.constant 0 : index
    %c0_17 = arith.constant 0 : index
    %11 = vector.load %arg4[%c0_16, %c0_17] : memref<160x128xf32, #tpu.memory_space<vmem>>, vector<64x128xf32>
    %cst = arith.constant dense<0.000000e+00> : vector<8x128xf32>
    %12 = tpu.matmul %1, %11, %cst {dimension_numbers = #tpu.dot_dimension_numbers<[1], [0], [0], [1], [0, 0, 1, 1], [], []>} : vector<8x64xf32>, vector<64x128xf32>, vector<8x128xf32> -> vector<8x128xf32>
    %c64 = arith.constant 64 : index
    %c0_18 = arith.constant 0 : index
    %13 = vector.load %arg4[%c64, %c0_18] : memref<160x128xf32, #tpu.memory_space<vmem>>, vector<64x128xf32>
    %cst_19 = arith.constant dense<0.000000e+00> : vector<8x128xf32>
    %14 = tpu.matmul %9, %13, %cst_19 {dimension_numbers = #tpu.dot_dimension_numbers<[1], [0], [0], [1], [0, 0, 1, 1], [], []>} : vector<8x64xf32>, vector<64x128xf32>, vector<8x128xf32> -> vector<8x128xf32>
    %15 = arith.addf %12, %14 : vector<8x128xf32>
    %c128 = arith.constant 128 : index
    %c0_20 = arith.constant 0 : index
    %16 = vector.load %arg4[%c128, %c0_20] : memref<160x128xf32, #tpu.memory_space<vmem>>, vector<32x128xf32>
    %cst_21 = arith.constant dense<0.000000e+00> : vector<8x128xf32>
    %17 = tpu.matmul %10, %16, %cst_21 {dimension_numbers = #tpu.dot_dimension_numbers<[1], [0], [0], [1], [0, 0, 1, 1], [], []>} : vector<8x32xf32>, vector<32x128xf32>, vector<8x128xf32> -> vector<8x128xf32>
    %18 = arith.addf %15, %17 : vector<8x128xf32>
    %19 = vector.broadcast %6 : vector<1x128xf32> to vector<8x128xf32>
    %20 = arith.addf %18, %19 : vector<8x128xf32>
    %21 = arith.negf %20 : vector<8x128xf32>
    %22 = math.exp %21 : vector<8x128xf32>
    %cst_22 = arith.constant 1.000000e+00 : f32
    %23 = vector.broadcast %cst_22 : f32 to vector<8x128xf32>
    %24 = arith.addf %23, %22 : vector<8x128xf32>
    %25 = arith.divf %23, %24 : vector<8x128xf32>
    %26 = arith.mulf %20, %25 : vector<8x128xf32>
    %c0_23 = arith.constant 0 : index
    %c0_24 = arith.constant 0 : index
    %27 = vector.load %arg5[%c0_23, %c0_24] : memref<128x128xf32, #tpu.memory_space<vmem>>, vector<128x128xf32>
    %cst_25 = arith.constant dense<0.000000e+00> : vector<8x128xf32>
    %28 = tpu.matmul %26, %27, %cst_25 {dimension_numbers = #tpu.dot_dimension_numbers<[1], [0], [0], [1], [0, 0, 1, 1], [], []>} : vector<8x128xf32>, vector<128x128xf32>, vector<8x128xf32> -> vector<8x128xf32>
    %29 = vector.broadcast %7 : vector<1x128xf32> to vector<8x128xf32>
    %30 = arith.addf %28, %29 : vector<8x128xf32>
    %31 = arith.negf %30 : vector<8x128xf32>
    %32 = math.exp %31 : vector<8x128xf32>
    %cst_26 = arith.constant 1.000000e+00 : f32
    %33 = vector.broadcast %cst_26 : f32 to vector<8x128xf32>
    %34 = arith.addf %33, %32 : vector<8x128xf32>
    %35 = arith.divf %33, %34 : vector<8x128xf32>
    %36 = arith.mulf %30, %35 : vector<8x128xf32>
    %c0_27 = arith.constant 0 : index
    %c0_28 = arith.constant 0 : index
    %37 = vector.load %arg6[%c0_27, %c0_28] : memref<128x128xf32, #tpu.memory_space<vmem>>, vector<128x128xf32>
    %cst_29 = arith.constant dense<0.000000e+00> : vector<8x128xf32>
    %38 = tpu.matmul %36, %37, %cst_29 {dimension_numbers = #tpu.dot_dimension_numbers<[1], [0], [0], [1], [0, 0, 1, 1], [], []>} : vector<8x128xf32>, vector<128x128xf32>, vector<8x128xf32> -> vector<8x128xf32>
    %39 = vector.broadcast %8 : vector<1x128xf32> to vector<8x128xf32>
    %40 = arith.addf %38, %39 : vector<8x128xf32>
    %c0_30 = arith.constant 0 : index
    %c0_31 = arith.constant 0 : index
    %c0_32 = arith.constant 0 : index
    %41 = vector.load %arg8[%c0_30, %c0_31, %c0_32] : memref<1x8x128xf32, #tpu.memory_space<vmem>>, vector<1x8x128xf32>
    %42 = vector.shape_cast %41 : vector<1x8x128xf32> to vector<8x128xf32>
    %43 = vector.shape_cast %40 : vector<8x128xf32> to vector<1x8x128xf32>
    tpu.vector_store %arg8[%c0_30, %c0_31, %c0_32], %43 {strides = array<i32>} : memref<1x8x128xf32, #tpu.memory_space<vmem>>, vector<1x8x128xf32>,
    return
  }
  func.func @transform_0(%arg0: i32, %arg1: i32) -> (i32, i32, i32) {
    %c0_i32 = arith.constant 0 : i32
    %c0_i32_0 = arith.constant 0 : i32
    return %arg0, %arg1, %c0_i32 : i32, i32, i32
  }
  func.func @transform_1(%arg0: i32, %arg1: i32) -> (i32, i32, i32) {
    %c1_i32 = arith.constant 1 : i32
    %0 = arith.addi %arg1, %c1_i32 : i32
    %c1_i32_0 = arith.constant 1 : i32
    %1 = arith.muli %0, %c1_i32_0 : i32
    %c0_i32 = arith.constant 0 : i32
    %c0_i32_1 = arith.constant 0 : i32
    return %arg0, %1, %c0_i32 : i32, i32, i32
  }
  func.func @transform_2(%arg0: i32, %arg1: i32) -> (i32, i32) {
    %c0_i32 = arith.constant 0 : i32
    %c0_i32_0 = arith.constant 0 : i32
    %c0_i32_1 = arith.constant 0 : i32
    return %c0_i32, %c0_i32_0 : i32, i32
  }
  func.func @transform_3(%arg0: i32, %arg1: i32) -> (i32, i32) {
    %c0_i32 = arith.constant 0 : i32
    %c0_i32_0 = arith.constant 0 : i32
    %c0_i32_1 = arith.constant 0 : i32
    return %c0_i32, %c0_i32_0 : i32, i32
  }
  func.func @transform_4(%arg0: i32, %arg1: i32) -> (i32, i32) {
    %c0_i32 = arith.constant 0 : i32
    %c0_i32_0 = arith.constant 0 : i32
    %c0_i32_1 = arith.constant 0 : i32
    return %c0_i32, %c0_i32_0 : i32, i32
  }
  func.func @transform_5(%arg0: i32, %arg1: i32) -> (i32, i32) {
    %c0_i32 = arith.constant 0 : i32
    %c0_i32_0 = arith.constant 0 : i32
    %c0_i32_1 = arith.constant 0 : i32
    return %c0_i32, %c0_i32_0 : i32, i32
  }
  func.func @transform_6(%arg0: i32, %arg1: i32) -> (i32, i32, i32) {
    %c0_i32 = arith.constant 0 : i32
    %c0_i32_0 = arith.constant 0 : i32
    return %arg0, %arg1, %c0_i32 : i32, i32, i32
  }
}

</mosaic_0001>

<llo_original>
// kernel: down_conv1d_block.1
$region0: #{down_conv1d_block.1}
  #allocation0 [shape = 'u32[]', space=smem, size = 0x4, offset = 0x4, fixed_abs, tag = 'smem constant byte address 0x4 - core index']
  #allocation1 [shape = 'u32[144,128]{1,0:T(1,128)}', space=vmem, size = 0x12000, scoped, tag = 'internal scratch']
  #allocation2 [shape = 'f32[16,64]{1,0:T(8,128)}', space=vmem, size = 0x2000, scoped, tag = 'scratch operand']
  %s0 = inlined_call_operand.vmem [shape: f32[2,16,64], index: 0, kind: input, shape index: {}, may-alias: {0,1}]
  %s1 = inlined_call_operand.vmem [shape: f32[2,16,64], index: 1, kind: input, shape index: {}, may-alias: {0,1}]
  %s2 = inlined_call_operand.vmem [shape: f32[160,128], index: 2, kind: input, shape index: {}]
  %s3 = inlined_call_operand.vmem [shape: f32[128,128], index: 3, kind: input, shape index: {}]
  %s4 = inlined_call_operand.vmem [shape: f32[128,128], index: 4, kind: input, shape index: {}]
  %s5 = inlined_call_operand.vmem [shape: f32[3,128], index: 5, kind: input, shape index: {}]
  %s6 = inlined_call_operand.hbm [shape: f32[2,8,128], index: 6, kind: output, shape index: {}]
  %s7 = sld [smem:[#allocation0]]
  $region57: #{down_conv1d_block.1} parent=0
    _
  %s9 = ssub.s32 1, %s7
  %s10 = scalar_select 0, %s9, %s7
  $region1: #{down_conv1d_block.1} parent=0
    #allocation3 [shape = 'u8[8192]{0}', space=vmem, size = 0x2000, scoped, tag = 'output window, operand 0']
    #allocation4 [shape = 's32[2]{0}', space=sflag, size = 0x8, scoped, tag = 'scoped memory for down_conv1d_block.1']
    %11 = vsyncpa [#allocation4], 0
    %s12 = scalar_lea.sflag [#allocation4], 1
    %13 = vsyncpa %s12, 0
    loop: start=0, step=1, limit=4
    $region2: #{down_conv1d_block.1} parent=1 // loop_pre_header
      _
    $region3: #{down_conv1d_block.1} parent=1 // loop_header
      %s15 = sphi 0, %s19
      %p16 = scmp.ge.s32.totalorder %s15, 4
      %s22 = sphi 0, %s34
      %s23 = sphi 0, %s30
      %s24 = sphi 0, %s22
      %s25 = sphi 0, %s23
      %s26 = sphi 0, %s24
      %s27 = sphi 0, %s25
      %s39 = sphi 0, %s41
      %s42 = sphi 0, %s39
      %s43 = sphi 0, %s42
      %s59 = sphi 0, %s43
      %s69 = sphi 0, %s71
      %s72 = sphi 0, %s69
      %s73 = sphi 0, %s72
      %s89 = sphi 0, %s73
      %s93 = sphi 0, %s93
      %s95 = sphi 0, %s93
      %s96 = sphi 0, %s95
      %s110 = sphi 0, %s96
      %s114 = sphi 0, %s114
      %s116 = sphi 0, %s114
      %s117 = sphi 0, %s116
      %s131 = sphi 0, %s117
      %s135 = sphi 0, %s135
      %s137 = sphi 0, %s135
      %s138 = sphi 0, %s137
      %s152 = sphi 0, %s138
      %s156 = sphi 0, %s156
      %s158 = sphi 0, %s156
      %s159 = sphi 0, %s158
      %s173 = sphi 0, %s159
      %s181 = sphi 0, %s183
      %s184 = sphi 0, %s181
      %s185 = sphi 0, %s184
      %s201 = sphi 0, %s185
    $region4: #{down_conv1d_block.1} parent=1 // loop_header_branch
      %18 = sbr.rel (%p16) target = $region8
    $region5: #{down_conv1d_block.1} parent=1 // loop_body
      %s20 = ssub.s32 %s15, 1
      %s21 = ssub.s32 %s15, 2
      %s28 = sadd.s32 1, %s23
      %p29 = scmp.ge.s32.totalorder %s28, 1
      %s30 = scalar_select %p29, 0, %s28
      %s31 = sadd.s32 1, %s22
      %s32 = scalar_select %p29, %s31, %s22
      %p33 = scmp.ge.s32.totalorder %s32, 2
      %s34 = scalar_select %p33, 0, %s32
      %s35 = ssub.s32 %s22, %s34
      %s36 = ssub.s32 %s23, %s30
      %s37 = sor.u32 %s35, %s36
      %p38 = scmp.eq.s32.totalorder %s37, 0
      %s40 = sadd.s32 %s39, 1
      %s41 = scalar_select %p38, %s39, %s40
      %p44 = pneg %p38
      %p45 = scmp.eq.s32.totalorder %s15, 1
      %p46 = por %p44, %p45
      %p47 = scmp.ne.s32.totalorder %s39, %s42
      %p48 = scmp.eq.s32.totalorder %s15, 0
      %p49 = por %p47, %p48
      %p50 = scmp.ne.s32.totalorder %s39, %s42
      %p51 = scmp.eq.s32.totalorder %s20, 1
      %p52 = por %p50, %p51
      %p53 = scmp.ne.s32.totalorder %s42, %s43
      %p54 = scmp.eq.s32.totalorder %s20, 0
      %p55 = por %p53, %p54
      %p56 = scmp.ne.s32.totalorder %s42, %s43
      %p57 = scmp.eq.s32.totalorder %s21, 1
      %p58 = por %p56, %p57
      %p60 = scmp.ne.s32.totalorder %s43, %s59
      %p61 = scmp.eq.s32.totalorder %s21, 0
      %p62 = por %p60, %p61
      %s63 = sadd.s32 %s23, 1
      %s64 = sadd.s32 %s30, 1
      %s65 = ssub.s32 %s22, %s34
      %s66 = ssub.s32 %s63, %s64
      %s67 = sor.u32 %s65, %s66
      %p68 = scmp.eq.s32.totalorder %s67, 0
      %s70 = sadd.s32 %s69, 1
      %s71 = scalar_select %p68, %s69, %s70
      %p74 = pneg %p68
      %p75 = scmp.eq.s32.totalorder %s15, 1
      %p76 = por %p74, %p75
      %p77 = scmp.ne.s32.totalorder %s69, %s72
      %p78 = scmp.eq.s32.totalorder %s15, 0
      %p79 = por %p77, %p78
      %p80 = scmp.ne.s32.totalorder %s69, %s72
      %p81 = scmp.eq.s32.totalorder %s20, 1
      %p82 = por %p80, %p81
      %p83 = scmp.ne.s32.totalorder %s72, %s73
      %p84 = scmp.eq.s32.totalorder %s20, 0
      %p85 = por %p83, %p84
      %p86 = scmp.ne.s32.totalorder %s72, %s73
      %p87 = scmp.eq.s32.totalorder %s21, 1
      %p88 = por %p86, %p87
      %p90 = scmp.ne.s32.totalorder %s73, %s89
      %p91 = scmp.eq.s32.totalorder %s21, 0
      %p92 = por %p90, %p91
      %s94 = sadd.s32 %s93, 1
      %p97 = scmp.eq.s32.totalorder %s15, 1
      %p98 = scmp.ne.s32.totalorder %s93, %s95
      %p99 = scmp.eq.s32.totalorder %s15, 0
      %p100 = por %p98, %p99
      %p101 = scmp.ne.s32.totalorder %s93, %s95
      %p102 = scmp.eq.s32.totalorder %s20, 1
      %p103 = por %p101, %p102
      %p104 = scmp.ne.s32.totalorder %s95, %s96
      %p105 = scmp.eq.s32.totalorder %s20, 0
      %p106 = por %p104, %p105
      %p107 = scmp.ne.s32.totalorder %s95, %s96
      %p108 = scmp.eq.s32.totalorder %s21, 1
      %p109 = por %p107, %p108
      %p111 = scmp.ne.s32.totalorder %s96, %s110
      %p112 = scmp.eq.s32.totalorder %s21, 0
      %p113 = por %p111, %p112
      %s115 = sadd.s32 %s114, 1
      %p118 = scmp.eq.s32.totalorder %s15, 1
      %p119 = scmp.ne.s32.totalorder %s114, %s116
      %p120 = scmp.eq.s32.totalorder %s15, 0
      %p121 = por %p119, %p120
      %p122 = scmp.ne.s32.totalorder %s114, %s116
      %p123 = scmp.eq.s32.totalorder %s20, 1
      %p124 = por %p122, %p123
      %p125 = scmp.ne.s32.totalorder %s116, %s117
      %p126 = scmp.eq.s32.totalorder %s20, 0
      %p127 = por %p125, %p126
      %p128 = scmp.ne.s32.totalorder %s116, %s117
      %p129 = scmp.eq.s32.totalorder %s21, 1
      %p130 = por %p128, %p129
      %p132 = scmp.ne.s32.totalorder %s117, %s131
      %p133 = scmp.eq.s32.totalorder %s21, 0
      %p134 = por %p132, %p133
      %s136 = sadd.s32 %s135, 1
      %p139 = scmp.eq.s32.totalorder %s15, 1
      %p140 = scmp.ne.s32.totalorder %s135, %s137
      %p141 = scmp.eq.s32.totalorder %s15, 0
      %p142 = por %p140, %p141
      %p143 = scmp.ne.s32.totalorder %s135, %s137
      %p144 = scmp.eq.s32.totalorder %s20, 1
      %p145 = por %p143, %p144
      %p146 = scmp.ne.s32.totalorder %s137, %s138
      %p147 = scmp.eq.s32.totalorder %s20, 0
      %p148 = por %p146, %p147
      %p149 = scmp.ne.s32.totalorder %s137, %s138
      %p150 = scmp.eq.s32.totalorder %s21, 1
      %p151 = por %p149, %p150
      %p153 = scmp.ne.s32.totalorder %s138, %s152
      %p154 = scmp.eq.s32.totalorder %s21, 0
      %p155 = por %p153, %p154
      %s157 = sadd.s32 %s156, 1
      %p160 = scmp.eq.s32.totalorder %s15, 1
      %p161 = scmp.ne.s32.totalorder %s156, %s158
      %p162 = scmp.eq.s32.totalorder %s15, 0
      %p163 = por %p161, %p162
      %p164 = scmp.ne.s32.totalorder %s156, %s158
      %p165 = scmp.eq.s32.totalorder %s20, 1
      %p166 = por %p164, %p165
      %p167 = scmp.ne.s32.totalorder %s158, %s159
      %p168 = scmp.eq.s32.totalorder %s20, 0
      %p169 = por %p167, %p168
      %p170 = scmp.ne.s32.totalorder %s158, %s159
      %p171 = scmp.eq.s32.totalorder %s21, 1
      %p172 = por %p170, %p171
      %p174 = scmp.ne.s32.totalorder %s159, %s173
      %p175 = scmp.eq.s32.totalorder %s21, 0
      %p176 = por %p174, %p175
      %s177 = ssub.s32 %s22, %s34
      %s178 = ssub.s32 %s23, %s30
      %s179 = sor.u32 %s177, %s178
      %p180 = scmp.eq.s32.totalorder %s179, 0
      %s182 = sadd.s32 %s181, 1
      %s183 = scalar_select %p180, %s181, %s182
      %p186 = pneg %p180
      %p187 = scmp.eq.s32.totalorder %s15, 1
      %p188 = por %p186, %p187
      %p189 = scmp.ne.s32.totalorder %s181, %s184
      %p190 = scmp.eq.s32.totalorder %s15, 0
      %p191 = por %p189, %p190
      %p192 = scmp.ne.s32.totalorder %s181, %s184
      %p193 = scmp.eq.s32.totalorder %s20, 1
      %p194 = por %p192, %p193
      %p195 = scmp.ne.s32.totalorder %s184, %s185
      %p196 = scmp.eq.s32.totalorder %s20, 0
      %p197 = por %p195, %p196
      %p198 = scmp.ne.s32.totalorder %s184, %s185
      %p199 = scmp.eq.s32.totalorder %s21, 1
      %p200 = por %p198, %p199
      %p202 = scmp.ne.s32.totalorder %s185, %s201
      %p203 = scmp.eq.s32.totalorder %s21, 0
      %p204 = por %p202, %p203
      %p205 = scmp.le.s32.totalorder 1, %s15
      %p206 = scmp.lt.s32.totalorder %s15, 3
      %p207 = pnand %p205, %p206
      %p208 = pneg %p207
      // Predicated region
      $region9: #{down_conv1d_block.1} parent=5 // pred_check
        _
      $region10: #{down_conv1d_block.1} parent=5 // pred_check_branch
        %210 = sbr.rel (%p207) target = $region12
      $region11: #{down_conv1d_block.1} parent=5 // pred_region
        %s211 = ssub.s32 %s15, 1
        // Predicated region
        $region13: #{down_conv1d_block.1} parent=11 // pred_check
          %p212 = pneg %p106
        $region14: #{down_conv1d_block.1} parent=11 // pred_check_branch
          %214 = sbr.rel (%p212) target = $region16
        $region15: #{down_conv1d_block.1} parent=11 // pred_region
          _
        $region16: #{down_conv1d_block.1} parent=11 // pred_fallthru
          _
        // Predicated region
        $region17: #{down_conv1d_block.1} parent=11 // pred_check
          %p215 = pneg %p127
        $region18: #{down_conv1d_block.1} parent=11 // pred_check_branch
          %217 = sbr.rel (%p215) target = $region20
        $region19: #{down_conv1d_block.1} parent=11 // pred_region
          _
        $region20: #{down_conv1d_block.1} parent=11 // pred_fallthru
          _
        // Predicated region
        $region21: #{down_conv1d_block.1} parent=11 // pred_check
          %p218 = pneg %p148
        $region22: #{down_conv1d_block.1} parent=11 // pred_check_branch
          %220 = sbr.rel (%p218) target = $region24
        $region23: #{down_conv1d_block.1} parent=11 // pred_region
          _
        $region24: #{down_conv1d_block.1} parent=11 // pred_fallthru
          _
        // Predicated region
        $region25: #{down_conv1d_block.1} parent=11 // pred_check
          %p221 = pneg %p169
        $region26: #{down_conv1d_block.1} parent=11 // pred_check_branch
          %223 = sbr.rel (%p221) target = $region28
        $region27: #{down_conv1d_block.1} parent=11 // pred_region
          _
        $region28: #{down_conv1d_block.1} parent=11 // pred_fallthru
          _
      $region12: #{down_conv1d_block.1} parent=5 // pred_fallthru
        _
      %p224 = scmp.lt.s32.totalorder %s15, 2
      // Predicated region
      $region29: #{down_conv1d_block.1} parent=5 // pred_check
        %p225 = pneg %p224
      $region30: #{down_conv1d_block.1} parent=5 // pred_check_branch
        %227 = sbr.rel (%p225) target = $region32
      $region31: #{down_conv1d_block.1} parent=5 // pred_region
        // Predicated region
        $region33: #{down_conv1d_block.1} parent=31 // pred_check
          %p228 = pneg %p49
        $region34: #{down_conv1d_block.1} parent=31 // pred_check_branch
          %230 = sbr.rel (%p228) target = $region36
        $region35: #{down_conv1d_block.1} parent=31 // pred_region
          %p231 = scmp.lt.s32.totalorder %s22, 1
          %s232 = scalar_select %p231, %s22, 1
          %p233 = scmp.lt.s32.totalorder %s23, 1
          %s234 = scalar_select %p233, %s23, 1
          %s235 = smul.addr %s232, 2
          %s236 = sadd.s32 %s234, %s235
          %s237 = smul.addr %s236, 8
          %s238 = scalar_lea.vmem %s0, %s237
        $region36: #{down_conv1d_block.1} parent=31 // pred_fallthru
          _
        // Predicated region
        $region37: #{down_conv1d_block.1} parent=31 // pred_check
          %p239 = pneg %p79
        $region38: #{down_conv1d_block.1} parent=31 // pred_check_branch
          %241 = sbr.rel (%p239) target = $region40
        $region39: #{down_conv1d_block.1} parent=31 // pred_region
          %s242 = sadd.s32 %s23, 1
          %p243 = scmp.lt.s32.totalorder %s22, 1
          %s244 = scalar_select %p243, %s22, 1
          %p245 = scmp.lt.s32.totalorder %s242, 1
          %s246 = scalar_select %p245, %s242, 1
          %s247 = smul.addr %s244, 2
          %s248 = sadd.s32 %s246, %s247
          %s249 = smul.addr %s248, 8
          %s250 = scalar_lea.vmem %s1, %s249
          %s251 = sadd.s32 %s23, 1
        $region40: #{down_conv1d_block.1} parent=31 // pred_fallthru
          _
      $region32: #{down_conv1d_block.1} parent=5 // pred_fallthru
        _
      %p252 = scmp.le.s32.totalorder 1, %s15
      %p253 = scmp.lt.s32.totalorder %s15, 3
      %p254 = pnand %p252, %p253
      %p255 = pneg %p254
      // Predicated region
      $region41: #{down_conv1d_block.1} parent=5 // pred_check
        _
      $region42: #{down_conv1d_block.1} parent=5 // pred_check_branch
        %257 = sbr.rel (%p254) target = $region44
      $region43: #{down_conv1d_block.1} parent=5 // pred_region
        %s258 = ssub.s32 %s15, 1
        %p259 = scmp.lt.s32.totalorder %s24, 1
        %s260 = scalar_select %p259, %s24, 1
        %p261 = scmp.lt.s32.totalorder %s25, 1
        %s262 = scalar_select %p261, %s25, 1
        %s263 = smul.addr %s260, 2
        %s264 = sadd.s32 %s262, %s263
        %s265 = smul.addr %s264, 8
        %s266 = scalar_lea.vmem %s0, %s265
        %p267 = pneg %p55
        %p268 = pneg %p52
        %s269 = sadd.s32 %s25, 1
        %p270 = scmp.lt.s32.totalorder %s24, 1
        %s271 = scalar_select %p270, %s24, 1
        %p272 = scmp.lt.s32.totalorder %s269, 1
        %s273 = scalar_select %p272, %s269, 1
        %s274 = smul.addr %s271, 2
        %s275 = sadd.s32 %s273, %s274
        %s276 = smul.addr %s275, 8
        %s277 = scalar_lea.vmem %s1, %s276
        %p278 = pneg %p85
        %p279 = pneg %p82
        %p280 = pneg %p106
        %p281 = pneg %p103
        %p282 = pneg %p127
        %p283 = pneg %p124
        %p284 = pneg %p148
        %p285 = pneg %p145
        %p286 = pneg %p169
        %p287 = pneg %p166
        %p288 = pneg %p197
        %p289 = pneg %p194
        %s290 = sand.u32 %s184, 1
        %s291 = scalar_lea.sflag [#allocation4], %s290
        %s292 = sand.u32 %s184, 1
        %s293 = smul.addr %s292, 8
        %s294 = scalar_lea.vmem [#allocation3], %s293
        %p295 = scmp.lt.s32.totalorder %s24, 1
        %s296 = scalar_select %p295, %s24, 1
        %p297 = scmp.lt.s32.totalorder %s25, 1
        %s298 = scalar_select %p297, %s25, 1
        %s299 = smul.addr %s296, 2
        %s300 = sadd.s32 %s298, %s299
        %s301 = smul.addr %s300, 8
        %s302 = scalar_lea.vmem %s0, %s301
        %s303 = sadd.s32 %s25, 1
        %p304 = scmp.lt.s32.totalorder %s24, 1
        %s305 = scalar_select %p304, %s24, 1
        %p306 = scmp.lt.s32.totalorder %s303, 1
        %s307 = scalar_select %p306, %s303, 1
        %s308 = smul.addr %s305, 2
        %s309 = sadd.s32 %s307, %s308
        %s310 = smul.addr %s309, 8
        %s311 = scalar_lea.vmem %s1, %s310
        %s312 = sadd.s32 %s25, 1
        %v313 = vld [vmem:[%s302] sm:$0xff]
        %vm314 = vcmask 523264
        %315 = vst.msk [vmem:[#allocation2] sm:$0xff] %vm314, %v313
        %v316 = vld [vmem:[%s311] sm:$0xff]
        %317 = vst.msk [vmem:[#allocation2 + $0x8] sm:$0xff] %vm314, %v316
        %v318 = vld [vmem:[%s5] sm:$0x1]
        %v319 = vld [vmem:[%s5 + $0x1] sm:$0x1]
        %v320 = vld [vmem:[%s5 + $0x2] sm:$0x1]
        %v321 = vld [vmem:[#allocation2 + $0x1] sm:$0xff]
        %v322 = vld [vmem:[#allocation2 + $0x2] sm:$0xff]
        %v323 = vld [vmem:[%s2] sm:$0xff]
        %v324 = vld [vmem:[%s2 + $0x8] sm:$0xff]
        %v325 = vld [vmem:[%s2 + $0x10] sm:$0xff]
        %v326 = vld [vmem:[%s2 + $0x18] sm:$0xff]
        %v327 = vld [vmem:[%s2 + $0x20] sm:$0xff]
        %v328 = vld [vmem:[%s2 + $0x28] sm:$0xff]
        %v329 = vld [vmem:[%s2 + $0x30] sm:$0xff]
        %v330 = vld [vmem:[%s2 + $0x38] sm:$0xff]
        %v331 = vld [vmem:[%s2 + $0x40] sm:$0xff]
        %v332 = vld [vmem:[%s2 + $0x48] sm:$0xff]
        %v333 = vld [vmem:[%s2 + $0x50] sm:$0xff]
        %v334 = vld [vmem:[%s2 + $0x58] sm:$0xff]
        %v335 = vld [vmem:[%s2 + $0x60] sm:$0xff]
        %v336 = vld [vmem:[%s2 + $0x68] sm:$0xff]
        %v337 = vld [vmem:[%s2 + $0x70] sm:$0xff]
        %v338 = vld [vmem:[%s2 + $0x78] sm:$0xff]
        %v340 = vsel %vm314, %v321, 0
        %342 = vmatprep.subr.mxu0 0.0
        %343 = vmatpush1.msra.mxu0 %v331
        %344 = vmatprep.subr.mxu0 0.0
        %345 = vmatpush1.msra.mxu0 %v332
        %346 = vmatprep.subr.mxu0 0.0
        %347 = vmatpush1.msra.mxu0 %v333
        %348 = vmatprep.subr.mxu0 0.0
        %349 = vmatpush1.msra.mxu0 %v334
        %350 = vmatprep.subr.mxu0 0.0
        %351 = vmatpush1.msra.mxu0 %v335
        %352 = vmatprep.subr.mxu0 0.0
        %353 = vmatpush1.msra.mxu0 %v336
        %354 = vmatprep.subr.mxu0 0.0
        %355 = vmatpush1.msra.mxu0 %v337
        %356 = vmatprep.subr.mxu0 0.0
        %357 = vmatpush1.msra.mxu0 %v338
        %358 = vmatprep.subr.mxu0 0.0
        %359 = vmatpush1.msra.mxu0 0.0
        %360 = vmatprep.subr.mxu0 0.0
        %361 = vmatpush1.msra.mxu0 0.0
        %362 = vmatprep.subr.mxu0 0.0
        %363 = vmatpush1.msra.mxu0 0.0
        %364 = vmatprep.subr.mxu0 0.0
        %365 = vmatpush1.msra.mxu0 0.0
        %366 = vmatprep.subr.mxu0 0.0
        %367 = vmatpush1.msra.mxu0 0.0
        %368 = vmatprep.subr.mxu0 0.0
        %369 = vmatpush1.msra.mxu0 0.0
        %370 = vmatprep.subr.mxu0 0.0
        %371 = vmatpush1.msra.mxu0 0.0
        %372 = vmatprep.subr.mxu0 0.0
        %373 = vmatpush1.msra.mxu0 0.0
        %374 = vmatprep.subr.mxu0 0.0
        %375 = vmatpush1.msra.mxu0 0.0
        %376 = vmatprep.subr.mxu0 0.0
        %377 = vmatpush1.msra.mxu0 0.0
        %378 = vmatprep.subr.mxu0 0.0
        %379 = vmatpush1.msra.mxu0 0.0
        %380 = vmatprep.subr.mxu0 0.0
        %381 = vmatpush1.msra.mxu0 0.0
        %382 = vmatprep.subr.mxu0 0.0
        %383 = vmatpush1.msra.mxu0 0.0
        %384 = vmatprep.subr.mxu0 0.0
        %385 = vmatpush1.msra.mxu0 0.0
        %386 = vmatprep.subr.mxu0 0.0
        %387 = vmatpush1.msra.mxu0 0.0
        %388 = vmatprep.subr.mxu0 0.0
        %389 = vmatpush1.msra.mxu0 0.0
        %390 = vmatprep.subr.mxu0 0.0
        %391 = vmatpush1.msra.mxu0 0.0
        %392 = vmatprep.subr.mxu0 0.0
        %393 = vmatpush1.msra.mxu0 0.0
        %394 = vmatprep.subr.mxu0 0.0
        %395 = vmatpush1.msra.mxu0 0.0
        %396 = vmatprep.subr.mxu0 0.0
        %397 = vmatpush1.msra.mxu0 0.0
        %398 = vmatprep.subr.mxu0 0.0
        %399 = vmatpush1.msra.mxu0 0.0
        %400 = vmatprep.subr.mxu0 0.0
        %401 = vmatpush1.msra.mxu0 0.0
        %402 = vmatprep.subr.mxu0 0.0
        %403 = vmatpush1.msra.mxu0 0.0
        %404 = vmatprep.subr.mxu0 0.0
        %405 = vmatpush1.msra.mxu0 0.0
        %406 = vmatprep.mubr.f32.mxu0 0.0
        %407 = vmatmul.mubr.f32.gmra.mrb[0].mxu0 %v340
        %v408 = vpop.f32.mrb[0].mxu0
        %v409 = vadd.f32 0.0, %v408
        %v410 = vpop.f32.mrb[0].mxu0
        %411 = vdwg.mxu0
        %v413 = vsel %vm314, %v313, 0
        %415 = vmatprep.subr.mxu0 0.0
        %416 = vmatpush1.msra.mxu0 %v323
        %417 = vmatprep.subr.mxu0 0.0
        %418 = vmatpush1.msra.mxu0 %v324
        %419 = vmatprep.subr.mxu0 0.0
        %420 = vmatpush1.msra.mxu0 %v325
        %421 = vmatprep.subr.mxu0 0.0
        %422 = vmatpush1.msra.mxu0 %v326
        %423 = vmatprep.subr.mxu0 0.0
        %424 = vmatpush1.msra.mxu0 %v327
        %425 = vmatprep.subr.mxu0 0.0
        %426 = vmatpush1.msra.mxu0 %v328
        %427 = vmatprep.subr.mxu0 0.0
        %428 = vmatpush1.msra.mxu0 %v329
        %429 = vmatprep.subr.mxu0 0.0
        %430 = vmatpush1.msra.mxu0 %v330
        %431 = vmatprep.subr.mxu0 0.0
        %432 = vmatpush1.msra.mxu0 0.0
        %433 = vmatprep.subr.mxu0 0.0
        %434 = vmatpush1.msra.mxu0 0.0
        %435 = vmatprep.subr.mxu0 0.0
        %436 = vmatpush1.msra.mxu0 0.0
        %437 = vmatprep.subr.mxu0 0.0
        %438 = vmatpush1.msra.mxu0 0.0
        %439 = vmatprep.subr.mxu0 0.0
        %440 = vmatpush1.msra.mxu0 0.0
        %441 = vmatprep.subr.mxu0 0.0
        %442 = vmatpush1.msra.mxu0 0.0
        %443 = vmatprep.subr.mxu0 0.0
        %444 = vmatpush1.msra.mxu0 0.0
        %445 = vmatprep.subr.mxu0 0.0
        %446 = vmatpush1.msra.mxu0 0.0
        %447 = vmatprep.subr.mxu0 0.0
        %448 = vmatpush1.msra.mxu0 0.0
        %449 = vmatprep.subr.mxu0 0.0
        %450 = vmatpush1.msra.mxu0 0.0
        %451 = vmatprep.subr.mxu0 0.0
        %452 = vmatpush1.msra.mxu0 0.0
        %453 = vmatprep.subr.mxu0 0.0
        %454 = vmatpush1.msra.mxu0 0.0
        %455 = vmatprep.subr.mxu0 0.0
        %456 = vmatpush1.msra.mxu0 0.0
        %457 = vmatprep.subr.mxu0 0.0
        %458 = vmatpush1.msra.mxu0 0.0
        %459 = vmatprep.subr.mxu0 0.0
        %460 = vmatpush1.msra.mxu0 0.0
        %461 = vmatprep.subr.mxu0 0.0
        %462 = vmatpush1.msra.mxu0 0.0
        %463 = vmatprep.subr.mxu0 0.0
        %464 = vmatpush1.msra.mxu0 0.0
        %465 = vmatprep.subr.mxu0 0.0
        %466 = vmatpush1.msra.mxu0 0.0
        %467 = vmatprep.subr.mxu0 0.0
        %468 = vmatpush1.msra.mxu0 0.0
        %469 = vmatprep.subr.mxu0 0.0
        %470 = vmatpush1.msra.mxu0 0.0
        %471 = vmatprep.subr.mxu0 0.0
        %472 = vmatpush1.msra.mxu0 0.0
        %473 = vmatprep.subr.mxu0 0.0
        %474 = vmatpush1.msra.mxu0 0.0
        %475 = vmatprep.subr.mxu0 0.0
        %476 = vmatpush1.msra.mxu0 0.0
        %477 = vmatprep.subr.mxu0 0.0
        %478 = vmatpush1.msra.mxu0 0.0
        %479 = vmatprep.mubr.f32.mxu0 0.0
        %480 = vmatmul.mubr.f32.gmra.mrb[0].mxu0 %v413
        %v481 = vpop.f32.mrb[0].mxu0
        %v482 = vadd.f32 %v409, %v481
        %v483 = vpop.f32.mrb[0].mxu0
        %484 = vdwg.mxu0
        %v485 = vld [vmem:[%s2 + $0x80] sm:$0xff]
        %v486 = vld [vmem:[%s2 + $0x88] sm:$0xff]
        %v487 = vld [vmem:[%s2 + $0x90] sm:$0xff]
        %v488 = vld [vmem:[%s2 + $0x98] sm:$0xff]
        %vm489 = vcmask 261120
        %v491 = vsel %vm489, %v322, 0
        %493 = vmatprep.subr.mxu0 0.0
        %494 = vmatpush1.msra.mxu0 %v485
        %495 = vmatprep.subr.mxu0 0.0
        %496 = vmatpush1.msra.mxu0 %v486
        %497 = vmatprep.subr.mxu0 0.0
        %498 = vmatpush1.msra.mxu0 %v487
        %499 = vmatprep.subr.mxu0 0.0
        %500 = vmatpush1.msra.mxu0 %v488
        %501 = vmatprep.subr.mxu0 0.0
        %502 = vmatpush1.msra.mxu0 0.0
        %503 = vmatprep.subr.mxu0 0.0
        %504 = vmatpush1.msra.mxu0 0.0
        %505 = vmatprep.subr.mxu0 0.0
        %506 = vmatpush1.msra.mxu0 0.0
        %507 = vmatprep.subr.mxu0 0.0
        %508 = vmatpush1.msra.mxu0 0.0
        %509 = vmatprep.subr.mxu0 0.0
        %510 = vmatpush1.msra.mxu0 0.0
        %511 = vmatprep.subr.mxu0 0.0
        %512 = vmatpush1.msra.mxu0 0.0
        %513 = vmatprep.subr.mxu0 0.0
        %514 = vmatpush1.msra.mxu0 0.0
        %515 = vmatprep.subr.mxu0 0.0
        %516 = vmatpush1.msra.mxu0 0.0
        %517 = vmatprep.subr.mxu0 0.0
        %518 = vmatpush1.msra.mxu0 0.0
        %519 = vmatprep.subr.mxu0 0.0
        %520 = vmatpush1.msra.mxu0 0.0
        %521 = vmatprep.subr.mxu0 0.0
        %522 = vmatpush1.msra.mxu0 0.0
        %523 = vmatprep.subr.mxu0 0.0
        %524 = vmatpush1.msra.mxu0 0.0
        %525 = vmatprep.subr.mxu0 0.0
        %526 = vmatpush1.msra.mxu0 0.0
        %527 = vmatprep.subr.mxu0 0.0
        %528 = vmatpush1.msra.mxu0 0.0
        %529 = vmatprep.subr.mxu0 0.0
        %530 = vmatpush1.msra.mxu0 0.0
        %531 = vmatprep.subr.mxu0 0.0
        %532 = vmatpush1.msra.mxu0 0.0
        %533 = vmatprep.subr.mxu0 0.0
        %534 = vmatpush1.msra.mxu0 0.0
        %535 = vmatprep.subr.mxu0 0.0
        %536 = vmatpush1.msra.mxu0 0.0
        %537 = vmatprep.subr.mxu0 0.0
        %538 = vmatpush1.msra.mxu0 0.0
        %539 = vmatprep.subr.mxu0 0.0
        %540 = vmatpush1.msra.mxu0 0.0
        %541 = vmatprep.subr.mxu0 0.0
        %542 = vmatpush1.msra.mxu0 0.0
        %543 = vmatprep.subr.mxu0 0.0
        %544 = vmatpush1.msra.mxu0 0.0
        %545 = vmatprep.subr.mxu0 0.0
        %546 = vmatpush1.msra.mxu0 0.0
        %547 = vmatprep.subr.mxu0 0.0
        %548 = vmatpush1.msra.mxu0 0.0
        %549 = vmatprep.subr.mxu0 0.0
        %550 = vmatpush1.msra.mxu0 0.0
        %551 = vmatprep.subr.mxu0 0.0
        %552 = vmatpush1.msra.mxu0 0.0
        %553 = vmatprep.subr.mxu0 0.0
        %554 = vmatpush1.msra.mxu0 0.0
        %555 = vmatprep.subr.mxu0 0.0
        %556 = vmatpush1.msra.mxu0 0.0
        %557 = vmatprep.mubr.f32.mxu0 0.0
        %558 = vmatmul.mubr.f32.gmra.mrb[0].mxu0 %v491
        %v559 = vpop.f32.mrb[0].mxu0
        %v560 = vadd.f32 0.0, %v559
        %v561 = vpop.f32.mrb[0].mxu0
        %562 = vdwg.mxu0
        %v563 = vadd.f32 %v482, %v560
        %v564 = vlaneseq
        %v565 = vshrl.u32 %v564, 7
        %v566 = vsub.s32 0, %v565
        %v567 = vrot.slane %v318, %v566
        %v568 = vadd.f32 %v563, %v567
        %v569 = vxor.u32 %v568, 2147483648
        %v570 = vmul.f32 %v569, 1.442695
        %v571 = vpow.pop %v570
        %v572 = vadd.f32 %v571, 1.0
        %v573 = vrcp.pop %v572
        %v574 = vmul.f32 1.0, %v573
        %v575 = vmul.f32 %v568, %v574
        %v576 = vld [vmem:[%s3] sm:$0xff]
        %v577 = vld [vmem:[%s3 + $0x8] sm:$0xff]
        %v578 = vld [vmem:[%s3 + $0x10] sm:$0xff]
        %v579 = vld [vmem:[%s3 + $0x18] sm:$0xff]
        %v580 = vld [vmem:[%s3 + $0x20] sm:$0xff]
        %v581 = vld [vmem:[%s3 + $0x28] sm:$0xff]
        %v582 = vld [vmem:[%s3 + $0x30] sm:$0xff]
        %v583 = vld [vmem:[%s3 + $0x38] sm:$0xff]
        %v584 = vld [vmem:[%s3 + $0x40] sm:$0xff]
        %v585 = vld [vmem:[%s3 + $0x48] sm:$0xff]
        %v586 = vld [vmem:[%s3 + $0x50] sm:$0xff]
        %v587 = vld [vmem:[%s3 + $0x58] sm:$0xff]
        %v588 = vld [vmem:[%s3 + $0x60] sm:$0xff]
        %v589 = vld [vmem:[%s3 + $0x68] sm:$0xff]
        %v590 = vld [vmem:[%s3 + $0x70] sm:$0xff]
        %v591 = vld [vmem:[%s3 + $0x78] sm:$0xff]
        %v592 = vlaneseq
        %v593 = vshrl.u32 %v592, 7
        %v594 = vsub.s32 0, %v593
        %v595 = vrot.slane %v319, %v594
        %596 = vmatprep.subr.mxu0 0.0
        %597 = vmatpush1.msra.mxu0 %v576
        %598 = vmatprep.subr.mxu0 0.0
        %599 = vmatpush1.msra.mxu0 %v577
        %600 = vmatprep.subr.mxu0 0.0
        %601 = vmatpush1.msra.mxu0 %v578
        %602 = vmatprep.subr.mxu0 0.0
        %603 = vmatpush1.msra.mxu0 %v579
        %604 = vmatprep.subr.mxu0 0.0
        %605 = vmatpush1.msra.mxu0 %v580
        %606 = vmatprep.subr.mxu0 0.0
        %607 = vmatpush1.msra.mxu0 %v581
        %608 = vmatprep.subr.mxu0 0.0
        %609 = vmatpush1.msra.mxu0 %v582
        %610 = vmatprep.subr.mxu0 0.0
        %611 = vmatpush1.msra.mxu0 %v583
        %612 = vmatprep.subr.mxu0 0.0
        %613 = vmatpush1.msra.mxu0 %v584
        %614 = vmatprep.subr.mxu0 0.0
        %615 = vmatpush1.msra.mxu0 %v585
        %616 = vmatprep.subr.mxu0 0.0
        %617 = vmatpush1.msra.mxu0 %v586
        %618 = vmatprep.subr.mxu0 0.0
        %619 = vmatpush1.msra.mxu0 %v587
        %620 = vmatprep.subr.mxu0 0.0
        %621 = vmatpush1.msra.mxu0 %v588
        %622 = vmatprep.subr.mxu0 0.0
        %623 = vmatpush1.msra.mxu0 %v589
        %624 = vmatprep.subr.mxu0 0.0
        %625 = vmatpush1.msra.mxu0 %v590
        %626 = vmatprep.subr.mxu0 0.0
        %627 = vmatpush1.msra.mxu0 %v591
        %628 = vmatprep.subr.mxu0 0.0
        %629 = vmatpush1.msra.mxu0 0.0
        %630 = vmatprep.subr.mxu0 0.0
        %631 = vmatpush1.msra.mxu0 0.0
        %632 = vmatprep.subr.mxu0 0.0
        %633 = vmatpush1.msra.mxu0 0.0
        %634 = vmatprep.subr.mxu0 0.0
        %635 = vmatpush1.msra.mxu0 0.0
        %636 = vmatprep.subr.mxu0 0.0
        %637 = vmatpush1.msra.mxu0 0.0
        %638 = vmatprep.subr.mxu0 0.0
        %639 = vmatpush1.msra.mxu0 0.0
        %640 = vmatprep.subr.mxu0 0.0
        %641 = vmatpush1.msra.mxu0 0.0
        %642 = vmatprep.subr.mxu0 0.0
        %643 = vmatpush1.msra.mxu0 0.0
        %644 = vmatprep.subr.mxu0 0.0
        %645 = vmatpush1.msra.mxu0 0.0
        %646 = vmatprep.subr.mxu0 0.0
        %647 = vmatpush1.msra.mxu0 0.0
        %648 = vmatprep.subr.mxu0 0.0
        %649 = vmatpush1.msra.mxu0 0.0
        %650 = vmatprep.subr.mxu0 0.0
        %651 = vmatpush1.msra.mxu0 0.0
        %652 = vmatprep.subr.mxu0 0.0
        %653 = vmatpush1.msra.mxu0 0.0
        %654 = vmatprep.subr.mxu0 0.0
        %655 = vmatpush1.msra.mxu0 0.0
        %656 = vmatprep.subr.mxu0 0.0
        %657 = vmatpush1.msra.mxu0 0.0
        %658 = vmatprep.subr.mxu0 0.0
        %659 = vmatpush1.msra.mxu0 0.0
        %660 = vmatprep.mubr.f32.mxu0 0.0
        %661 = vmatmul.mubr.f32.gmra.mrb[0].mxu0 %v575
        %v662 = vpop.f32.mrb[0].mxu0
        %v663 = vadd.f32 %v595, %v662
        %v664 = vpop.f32.mrb[0].mxu0
        %665 = vdwg.mxu0
        %v666 = vxor.u32 %v663, 2147483648
        %v667 = vmul.f32 %v666, 1.442695
        %v668 = vpow.pop %v667
        %v669 = vadd.f32 %v668, 1.0
        %v670 = vrcp.pop %v669
        %v671 = vmul.f32 1.0, %v670
        %v672 = vmul.f32 %v663, %v671
        %v673 = vld [vmem:[%s4] sm:$0xff]
        %v674 = vld [vmem:[%s4 + $0x8] sm:$0xff]
        %v675 = vld [vmem:[%s4 + $0x10] sm:$0xff]
        %v676 = vld [vmem:[%s4 + $0x18] sm:$0xff]
        %v677 = vld [vmem:[%s4 + $0x20] sm:$0xff]
        %v678 = vld [vmem:[%s4 + $0x28] sm:$0xff]
        %v679 = vld [vmem:[%s4 + $0x30] sm:$0xff]
        %v680 = vld [vmem:[%s4 + $0x38] sm:$0xff]
        %v681 = vld [vmem:[%s4 + $0x40] sm:$0xff]
        %v682 = vld [vmem:[%s4 + $0x48] sm:$0xff]
        %v683 = vld [vmem:[%s4 + $0x50] sm:$0xff]
        %v684 = vld [vmem:[%s4 + $0x58] sm:$0xff]
        %v685 = vld [vmem:[%s4 + $0x60] sm:$0xff]
        %v686 = vld [vmem:[%s4 + $0x68] sm:$0xff]
        %v687 = vld [vmem:[%s4 + $0x70] sm:$0xff]
        %v688 = vld [vmem:[%s4 + $0x78] sm:$0xff]
        %v689 = vlaneseq
        %v690 = vshrl.u32 %v689, 7
        %v691 = vsub.s32 0, %v690
        %v692 = vrot.slane %v320, %v691
        %693 = vmatprep.subr.mxu0 0.0
        %694 = vmatpush1.msra.mxu0 %v673
        %695 = vmatprep.subr.mxu0 0.0
        %696 = vmatpush1.msra.mxu0 %v674
        %697 = vmatprep.subr.mxu0 0.0
        %698 = vmatpush1.msra.mxu0 %v675
        %699 = vmatprep.subr.mxu0 0.0
        %700 = vmatpush1.msra.mxu0 %v676
        %701 = vmatprep.subr.mxu0 0.0
        %702 = vmatpush1.msra.mxu0 %v677
        %703 = vmatprep.subr.mxu0 0.0
        %704 = vmatpush1.msra.mxu0 %v678
        %705 = vmatprep.subr.mxu0 0.0
        %706 = vmatpush1.msra.mxu0 %v679
        %707 = vmatprep.subr.mxu0 0.0
        %708 = vmatpush1.msra.mxu0 %v680
        %709 = vmatprep.subr.mxu0 0.0
        %710 = vmatpush1.msra.mxu0 %v681
        %711 = vmatprep.subr.mxu0 0.0
        %712 = vmatpush1.msra.mxu0 %v682
        %713 = vmatprep.subr.mxu0 0.0
        %714 = vmatpush1.msra.mxu0 %v683
        %715 = vmatprep.subr.mxu0 0.0
        %716 = vmatpush1.msra.mxu0 %v684
        %717 = vmatprep.subr.mxu0 0.0
        %718 = vmatpush1.msra.mxu0 %v685
        %719 = vmatprep.subr.mxu0 0.0
        %720 = vmatpush1.msra.mxu0 %v686
        %721 = vmatprep.subr.mxu0 0.0
        %722 = vmatpush1.msra.mxu0 %v687
        %723 = vmatprep.subr.mxu0 0.0
        %724 = vmatpush1.msra.mxu0 %v688
        %725 = vmatprep.subr.mxu0 0.0
        %726 = vmatpush1.msra.mxu0 0.0
        %727 = vmatprep.subr.mxu0 0.0
        %728 = vmatpush1.msra.mxu0 0.0
        %729 = vmatprep.subr.mxu0 0.0
        %730 = vmatpush1.msra.mxu0 0.0
        %731 = vmatprep.subr.mxu0 0.0
        %732 = vmatpush1.msra.mxu0 0.0
        %733 = vmatprep.subr.mxu0 0.0
        %734 = vmatpush1.msra.mxu0 0.0
        %735 = vmatprep.subr.mxu0 0.0
        %736 = vmatpush1.msra.mxu0 0.0
        %737 = vmatprep.subr.mxu0 0.0
        %738 = vmatpush1.msra.mxu0 0.0
        %739 = vmatprep.subr.mxu0 0.0
        %740 = vmatpush1.msra.mxu0 0.0
        %741 = vmatprep.subr.mxu0 0.0
        %742 = vmatpush1.msra.mxu0 0.0
        %743 = vmatprep.subr.mxu0 0.0
        %744 = vmatpush1.msra.mxu0 0.0
        %745 = vmatprep.subr.mxu0 0.0
        %746 = vmatpush1.msra.mxu0 0.0
        %747 = vmatprep.subr.mxu0 0.0
        %748 = vmatpush1.msra.mxu0 0.0
        %749 = vmatprep.subr.mxu0 0.0
        %750 = vmatpush1.msra.mxu0 0.0
        %751 = vmatprep.subr.mxu0 0.0
        %752 = vmatpush1.msra.mxu0 0.0
        %753 = vmatprep.subr.mxu0 0.0
        %754 = vmatpush1.msra.mxu0 0.0
        %755 = vmatprep.subr.mxu0 0.0
        %756 = vmatpush1.msra.mxu0 0.0
        %757 = vmatprep.mubr.f32.mxu0 0.0
        %758 = vmatmul.mubr.f32.gmra.mrb[0].mxu0 %v672
        %v759 = vpop.f32.mrb[0].mxu0
        %v760 = vadd.f32 %v692, %v759
        %v761 = vpop.f32.mrb[0].mxu0
        %762 = vdwg.mxu0
        %763 = vst [vmem:[%s294] sm:$0xff] %v760
        %s764 = sand.u32 %s184, 1
        %s765 = scalar_lea.sflag [#allocation4], %s764
        %s766 = sand.u32 %s184, 1
        %s767 = smul.addr %s766, 8
        %s768 = scalar_lea.vmem [#allocation3], %s767
        // Predicated region
        $region45: #{down_conv1d_block.1} parent=43 // pred_check
          %p769 = pneg %p194
        $region46: #{down_conv1d_block.1} parent=43 // pred_check_branch
          %771 = sbr.rel (%p769) target = $region48
        $region47: #{down_conv1d_block.1} parent=43 // pred_region
          %s773 = ssub.s32 128, 128
          %774 = vsyncadd %s765, %s773
          %s775 = sadd.s32 %s25, %s24
          %s776 = smul.addr %s775, 128
          %s777 = scalar_lea.hbm %s6, %s776
          %s779 = sshll.u32 %s768, 4
          %s780 = int_to_ptr.vmem [resolvable:$true] %s779
          %782 = dma.vmem_to_hbm [thread:$0]  %s780, 128, %s777, %s765
        $region48: #{down_conv1d_block.1} parent=43 // pred_fallthru
          _
      $region44: #{down_conv1d_block.1} parent=5 // pred_fallthru
        _
      %p783 = scmp.le.s32.totalorder 2, %s15
      // Predicated region
      $region49: #{down_conv1d_block.1} parent=5 // pred_check
        %p784 = pneg %p783
      $region50: #{down_conv1d_block.1} parent=5 // pred_check_branch
        %786 = sbr.rel (%p784) target = $region52
      $region51: #{down_conv1d_block.1} parent=5 // pred_region
        %s787 = ssub.s32 %s15, 2
        // Predicated region
        $region53: #{down_conv1d_block.1} parent=51 // pred_check
          %p788 = pneg %p200
        $region54: #{down_conv1d_block.1} parent=51 // pred_check_branch
          %790 = sbr.rel (%p788) target = $region56
        $region55: #{down_conv1d_block.1} parent=51 // pred_region
          %s791 = sand.u32 %s185, 1
          %s792 = scalar_lea.sflag [#allocation4], %s791
          %s793 = sand.u32 %s185, 1
          %s794 = smul.addr %s793, 8
          %s795 = scalar_lea.vmem [#allocation3], %s794
          %796 = dma.done %s792, 128
        $region56: #{down_conv1d_block.1} parent=51 // pred_fallthru
          _
      $region52: #{down_conv1d_block.1} parent=5 // pred_fallthru
        _
    $region6: #{down_conv1d_block.1} parent=1 // loop_footer
      %s19 = sadd.s32 1, %s15
    $region7: #{down_conv1d_block.1} parent=1 // loop_footer_branch
      %14 = sbr.rel target = $region3
    $region8: #{down_conv1d_block.1} parent=1 // loop_exit
      _
    %797 = vsyncpa [#allocation4], 1
    %s798 = scalar_lea.sflag [#allocation4], 1
    %799 = vsyncpa %s798, 1

</llo_original>
